<compile_context>
chip_gen: v7x
topology: tpu7x:2x2x1
jax: 0.10.0
libtpu: 0.0.40
codegen_flags: <defaults>
</compile_context>

<pallas_src>
import jax
import jax.numpy as jnp
from jax.experimental import pallas as pl
from jax.experimental.pallas import tpu as pltpu

_HIDDEN = 10
_LANES = 128


def _mlp_kernel(p_ref, x_ref, o_ref):
    # p_ref: (32,) f32 in SMEM, packed as [w1(10) | b1(10) | w2(10) | b2(1) | pad(1)]
    # x_ref / o_ref: (TM, 128) f32 tiles (lane-dense batch).
    x = x_ref[...]
    # j = 0 term initializes the accumulator (no full-tile broadcast of b2).
    acc = p_ref[20] * jnp.tanh(p_ref[0] * x + p_ref[10])
    # Unrolled hidden loop: broadcast VPU math + EUP tanh; no MXU, no XLU.
    for j in range(1, _HIDDEN):
        acc = acc + p_ref[20 + j] * jnp.tanh(p_ref[j] * x + p_ref[10 + j])
    o_ref[...] = (acc + p_ref[30]).astype(o_ref.dtype)


def _round_up(a, b):
    return -(-a // b) * b


def model_alpha_forward(x, w1, b1, w2, b2, *, tile_rows=4096):
    """Forward pass of Model_alpha.

    x:  (B, 1) float32
    w1: (10, 1)  = torch i_h1[0].weight
    b1: (10,)    = torch i_h1[0].bias
    w2: (1, 10)  = torch h1_o.weight
    b2: (1,)     = torch h1_o.bias
    Returns (B, 1) float32.
    """
    B = x.shape[0]
    rows = pl.cdiv(B, _LANES)

    # Lane-dense layout: batch elements live on the 128-lane axis.
    if B % _LANES == 0:
        # Fast path: pure reshape, no pad / no trailing slice copy.
        x2d = x.astype(jnp.float32).reshape(rows, _LANES)
    else:
        xf = x.reshape(-1).astype(jnp.float32)
        # Pad only to one-row (128-lane) granularity, not to a tile multiple.
        x2d = jnp.pad(xf, (0, rows * _LANES - B)).reshape(rows, _LANES)

    # Tile height: big enough to amortize per-step overhead, but capped so the
    # "parallel" grid has >= 2 steps (lets v7x shard across both TCs), and
    # kept sublane-aligned (multiple of 8).
    tm = min(_round_up(tile_rows, 8), _round_up(pl.cdiv(rows, 2), 8))
    grid = (pl.cdiv(rows, tm),)

    # Pack all parameters into a single (32,) f32 SMEM input.
    params = jnp.concatenate([
        w1.reshape(_HIDDEN).astype(jnp.float32),
        b1.reshape(_HIDDEN).astype(jnp.float32),
        w2.reshape(_HIDDEN).astype(jnp.float32),
        b2.reshape(1).astype(jnp.float32),
        jnp.zeros((1,), jnp.float32),
    ])

    n_elem = rows * _LANES
    out = pl.pallas_call(
        _mlp_kernel,
        out_shape=jax.ShapeDtypeStruct((rows, _LANES), jnp.float32),
        grid=grid,
        in_specs=[pl.BlockSpec(memory_space=pltpu.MemorySpace.SMEM),
                  pl.BlockSpec((tm, _LANES), lambda i: (i, 0))],
        out_specs=pl.BlockSpec((tm, _LANES), lambda i: (i, 0)),
        compiler_params=pltpu.CompilerParams(
            dimension_semantics=("parallel",)),
        cost_estimate=pl.CostEstimate(
            flops=40 * n_elem,
            transcendentals=10 * n_elem,
            bytes_accessed=2 * n_elem * 4),
    )(params, x2d)

    if B % _LANES == 0:
        return out.reshape(B, 1)
    return out.reshape(-1)[:B].reshape(B, 1)


def _init_params(key):
    """Deterministic init matching PyTorch layer shapes/conventions:
    i_h1[0]: Linear(1, 10)  -> weight (10, 1), bias (10,)
    h1_o:    Linear(10, 1)  -> weight (1, 10), bias (1,)
    """
    k1, k2, k3, k4 = jax.random.split(key, 4)
    bound1 = 1.0  # fan_in = 1
    w1 = jax.random.uniform(k1, (10, 1), jnp.float32, -bound1, bound1)
    b1 = jax.random.uniform(k2, (10,), jnp.float32, -bound1, bound1)
    bound2 = 1.0 / jnp.sqrt(10.0)  # fan_in = 10
    w2 = jax.random.uniform(k3, (1, 10), jnp.float32, -bound2, bound2)
    b2 = jax.random.uniform(k4, (1,), jnp.float32, -bound2, bound2)
    return w1, b1, w2, b2


def _reference(x, w1, b1, w2, b2):
    h = jnp.tanh(x @ w1.T + b1.reshape(1, -1))
    return h @ w2.T + b2.reshape(1, -1)


if __name__ == "__main__":
    key = jax.random.PRNGKey(0)
    kp, kx1, kx2, kx3 = jax.random.split(key, 4)
    w1, b1, w2, b2 = _init_params(kp)

    # Small case (matches the module's (N, 1) input convention).
    B = 8
    x = jax.random.normal(kx1, (B, 1), jnp.float32)
    out = jax.block_until_ready(model_alpha_forward(x, w1, b1, w2, b2))
    ref = _reference(x, w1, b1, w2, b2)
    assert out.shape == (B, 1)
    assert jnp.allclose(out, ref, atol=1e-5, rtol=1e-5)

    # Non-multiple-of-128 batch exercises the row-pad + ragged-grid path.
    B2 = 300
    x2 = jax.random.normal(kx2, (B2, 1), jnp.float32)
    out2 = jax.block_until_ready(model_alpha_forward(x2, w1, b1, w2, b2))
    ref2 = _reference(x2, w1, b1, w2, b2)
    assert out2.shape == (B2, 1)
    assert jnp.allclose(out2, ref2, atol=1e-5, rtol=1e-5)

    # Multiple-of-128 batch exercises the no-pad fast path + multi-step grid.
    B3 = 1024
    x3 = jax.random.normal(kx3, (B3, 1), jnp.float32)
    out3 = jax.block_until_ready(model_alpha_forward(x3, w1, b1, w2, b2))
    ref3 = _reference(x3, w1, b1, w2, b2)
    assert out3.shape == (B3, 1)
    assert jnp.allclose(out3, ref3, atol=1e-5, rtol=1e-5)

    print("KERNEL_OK")
</pallas_src>

<mosaic_0001>
module attributes {stable_mosaic.version = 11 : i64} {
  func.func @_mlp_kernel(%arg0: i32, %arg1: memref<32xf32, #tpu.memory_space<smem>>, %arg2: memref<8x128xf32, #tpu.memory_space<vmem>>, %arg3: memref<8x128xf32, #tpu.memory_space<vmem>>) attributes {dimension_semantics = [#tpu.dimension_semantics<parallel>], iteration_bounds = array<i64: 1>, scalar_prefetch = 0 : i64, scratch_operands = 0 : i64, tpu.core_type = #tpu.core_type<tc>, window_params = [{transform_indices = @transform_0, window_bounds = array<i64: 32>}, {transform_indices = @transform_1, window_bounds = array<i64: 8, 128>}, {transform_indices = @transform_2, window_bounds = array<i64: 8, 128>}]} {
    %c0 = arith.constant 0 : index
    %c0_0 = arith.constant 0 : index
    %0 = vector.load %arg2[%c0, %c0_0] : memref<8x128xf32, #tpu.memory_space<vmem>>, vector<8x128xf32>
    %c20 = arith.constant 20 : index
    %1 = memref.load %arg1[%c20] : memref<32xf32, #tpu.memory_space<smem>>
    %c0_1 = arith.constant 0 : index
    %2 = memref.load %arg1[%c0_1] : memref<32xf32, #tpu.memory_space<smem>>
    %3 = vector.broadcast %2 : f32 to vector<8x128xf32>
    %4 = arith.mulf %3, %0 : vector<8x128xf32>
    %c10 = arith.constant 10 : index
    %5 = memref.load %arg1[%c10] : memref<32xf32, #tpu.memory_space<smem>>
    %6 = vector.broadcast %5 : f32 to vector<8x128xf32>
    %7 = arith.addf %4, %6 : vector<8x128xf32>
    %8 = math.tanh %7 : vector<8x128xf32>
    %9 = vector.broadcast %1 : f32 to vector<8x128xf32>
    %10 = arith.mulf %9, %8 : vector<8x128xf32>
    %c21 = arith.constant 21 : index
    %11 = memref.load %arg1[%c21] : memref<32xf32, #tpu.memory_space<smem>>
    %c1 = arith.constant 1 : index
    %12 = memref.load %arg1[%c1] : memref<32xf32, #tpu.memory_space<smem>>
    %13 = vector.broadcast %12 : f32 to vector<8x128xf32>
    %14 = arith.mulf %13, %0 : vector<8x128xf32>
    %c11 = arith.constant 11 : index
    %15 = memref.load %arg1[%c11] : memref<32xf32, #tpu.memory_space<smem>>
    %16 = vector.broadcast %15 : f32 to vector<8x128xf32>
    %17 = arith.addf %14, %16 : vector<8x128xf32>
    %18 = math.tanh %17 : vector<8x128xf32>
    %19 = vector.broadcast %11 : f32 to vector<8x128xf32>
    %20 = arith.mulf %19, %18 : vector<8x128xf32>
    %21 = arith.addf %10, %20 : vector<8x128xf32>
    %c22 = arith.constant 22 : index
    %22 = memref.load %arg1[%c22] : memref<32xf32, #tpu.memory_space<smem>>
    %c2 = arith.constant 2 : index
    %23 = memref.load %arg1[%c2] : memref<32xf32, #tpu.memory_space<smem>>
    %24 = vector.broadcast %23 : f32 to vector<8x128xf32>
    %25 = arith.mulf %24, %0 : vector<8x128xf32>
    %c12 = arith.constant 12 : index
    %26 = memref.load %arg1[%c12] : memref<32xf32, #tpu.memory_space<smem>>
    %27 = vector.broadcast %26 : f32 to vector<8x128xf32>
    %28 = arith.addf %25, %27 : vector<8x128xf32>
    %29 = math.tanh %28 : vector<8x128xf32>
    %30 = vector.broadcast %22 : f32 to vector<8x128xf32>
    %31 = arith.mulf %30, %29 : vector<8x128xf32>
    %32 = arith.addf %21, %31 : vector<8x128xf32>
    %c23 = arith.constant 23 : index
    %33 = memref.load %arg1[%c23] : memref<32xf32, #tpu.memory_space<smem>>
    %c3 = arith.constant 3 : index
    %34 = memref.load %arg1[%c3] : memref<32xf32, #tpu.memory_space<smem>>
    %35 = vector.broadcast %34 : f32 to vector<8x128xf32>
    %36 = arith.mulf %35, %0 : vector<8x128xf32>
    %c13 = arith.constant 13 : index
    %37 = memref.load %arg1[%c13] : memref<32xf32, #tpu.memory_space<smem>>
    %38 = vector.broadcast %37 : f32 to vector<8x128xf32>
    %39 = arith.addf %36, %38 : vector<8x128xf32>
    %40 = math.tanh %39 : vector<8x128xf32>
    %41 = vector.broadcast %33 : f32 to vector<8x128xf32>
    %42 = arith.mulf %41, %40 : vector<8x128xf32>
    %43 = arith.addf %32, %42 : vector<8x128xf32>
    %c24 = arith.constant 24 : index
    %44 = memref.load %arg1[%c24] : memref<32xf32, #tpu.memory_space<smem>>
    %c4 = arith.constant 4 : index
    %45 = memref.load %arg1[%c4] : memref<32xf32, #tpu.memory_space<smem>>
    %46 = vector.broadcast %45 : f32 to vector<8x128xf32>
    %47 = arith.mulf %46, %0 : vector<8x128xf32>
    %c14 = arith.constant 14 : index
    %48 = memref.load %arg1[%c14] : memref<32xf32, #tpu.memory_space<smem>>
    %49 = vector.broadcast %48 : f32 to vector<8x128xf32>
    %50 = arith.addf %47, %49 : vector<8x128xf32>
    %51 = math.tanh %50 : vector<8x128xf32>
    %52 = vector.broadcast %44 : f32 to vector<8x128xf32>
    %53 = arith.mulf %52, %51 : vector<8x128xf32>
    %54 = arith.addf %43, %53 : vector<8x128xf32>
    %c25 = arith.constant 25 : index
    %55 = memref.load %arg1[%c25] : memref<32xf32, #tpu.memory_space<smem>>
    %c5 = arith.constant 5 : index
    %56 = memref.load %arg1[%c5] : memref<32xf32, #tpu.memory_space<smem>>
    %57 = vector.broadcast %56 : f32 to vector<8x128xf32>
    %58 = arith.mulf %57, %0 : vector<8x128xf32>
    %c15 = arith.constant 15 : index
    %59 = memref.load %arg1[%c15] : memref<32xf32, #tpu.memory_space<smem>>
    %60 = vector.broadcast %59 : f32 to vector<8x128xf32>
    %61 = arith.addf %58, %60 : vector<8x128xf32>
    %62 = math.tanh %61 : vector<8x128xf32>
    %63 = vector.broadcast %55 : f32 to vector<8x128xf32>
    %64 = arith.mulf %63, %62 : vector<8x128xf32>
    %65 = arith.addf %54, %64 : vector<8x128xf32>
    %c26 = arith.constant 26 : index
    %66 = memref.load %arg1[%c26] : memref<32xf32, #tpu.memory_space<smem>>
    %c6 = arith.constant 6 : index
    %67 = memref.load %arg1[%c6] : memref<32xf32, #tpu.memory_space<smem>>
    %68 = vector.broadcast %67 : f32 to vector<8x128xf32>
    %69 = arith.mulf %68, %0 : vector<8x128xf32>
    %c16 = arith.constant 16 : index
    %70 = memref.load %arg1[%c16] : memref<32xf32, #tpu.memory_space<smem>>
    %71 = vector.broadcast %70 : f32 to vector<8x128xf32>
    %72 = arith.addf %69, %71 : vector<8x128xf32>
    %73 = math.tanh %72 : vector<8x128xf32>
    %74 = vector.broadcast %66 : f32 to vector<8x128xf32>
    %75 = arith.mulf %74, %73 : vector<8x128xf32>
    %76 = arith.addf %65, %75 : vector<8x128xf32>
    %c27 = arith.constant 27 : index
    %77 = memref.load %arg1[%c27] : memref<32xf32, #tpu.memory_space<smem>>
    %c7 = arith.constant 7 : index
    %78 = memref.load %arg1[%c7] : memref<32xf32, #tpu.memory_space<smem>>
    %79 = vector.broadcast %78 : f32 to vector<8x128xf32>
    %80 = arith.mulf %79, %0 : vector<8x128xf32>
    %c17 = arith.constant 17 : index
    %81 = memref.load %arg1[%c17] : memref<32xf32, #tpu.memory_space<smem>>
    %82 = vector.broadcast %81 : f32 to vector<8x128xf32>
    %83 = arith.addf %80, %82 : vector<8x128xf32>
    %84 = math.tanh %83 : vector<8x128xf32>
    %85 = vector.broadcast %77 : f32 to vector<8x128xf32>
    %86 = arith.mulf %85, %84 : vector<8x128xf32>
    %87 = arith.addf %76, %86 : vector<8x128xf32>
    %c28 = arith.constant 28 : index
    %88 = memref.load %arg1[%c28] : memref<32xf32, #tpu.memory_space<smem>>
    %c8 = arith.constant 8 : index
    %89 = memref.load %arg1[%c8] : memref<32xf32, #tpu.memory_space<smem>>
    %90 = vector.broadcast %89 : f32 to vector<8x128xf32>
    %91 = arith.mulf %90, %0 : vector<8x128xf32>
    %c18 = arith.constant 18 : index
    %92 = memref.load %arg1[%c18] : memref<32xf32, #tpu.memory_space<smem>>
    %93 = vector.broadcast %92 : f32 to vector<8x128xf32>
    %94 = arith.addf %91, %93 : vector<8x128xf32>
    %95 = math.tanh %94 : vector<8x128xf32>
    %96 = vector.broadcast %88 : f32 to vector<8x128xf32>
    %97 = arith.mulf %96, %95 : vector<8x128xf32>
    %98 = arith.addf %87, %97 : vector<8x128xf32>
    %c29 = arith.constant 29 : index
    %99 = memref.load %arg1[%c29] : memref<32xf32, #tpu.memory_space<smem>>
    %c9 = arith.constant 9 : index
    %100 = memref.load %arg1[%c9] : memref<32xf32, #tpu.memory_space<smem>>
    %101 = vector.broadcast %100 : f32 to vector<8x128xf32>
    %102 = arith.mulf %101, %0 : vector<8x128xf32>
    %c19 = arith.constant 19 : index
    %103 = memref.load %arg1[%c19] : memref<32xf32, #tpu.memory_space<smem>>
    %104 = vector.broadcast %103 : f32 to vector<8x128xf32>
    %105 = arith.addf %102, %104 : vector<8x128xf32>
    %106 = math.tanh %105 : vector<8x128xf32>
    %107 = vector.broadcast %99 : f32 to vector<8x128xf32>
    %108 = arith.mulf %107, %106 : vector<8x128xf32>
    %109 = arith.addf %98, %108 : vector<8x128xf32>
    %c30 = arith.constant 30 : index
    %110 = memref.load %arg1[%c30] : memref<32xf32, #tpu.memory_space<smem>>
    %111 = vector.broadcast %110 : f32 to vector<8x128xf32>
    %112 = arith.addf %109, %111 : vector<8x128xf32>
    %c0_2 = arith.constant 0 : index
    %c0_3 = arith.constant 0 : index
    %113 = vector.load %arg3[%c0_2, %c0_3] : memref<8x128xf32, #tpu.memory_space<vmem>>, vector<8x128xf32>
    tpu.vector_store %arg3[%c0_2, %c0_3], %112 {strides = array<i32>} : memref<8x128xf32, #tpu.memory_space<vmem>>, vector<8x128xf32>,
    return
  }
  func.func @transform_0(%arg0: i32) -> i32 {
    %c0_i32 = arith.constant 0 : i32
    %c0_i32_0 = arith.constant 0 : i32
    return %c0_i32 : i32
  }
  func.func @transform_1(%arg0: i32) -> (i32, i32) {
    %c0_i32 = arith.constant 0 : i32
    %c0_i32_0 = arith.constant 0 : i32
    return %arg0, %c0_i32 : i32, i32
  }
  func.func @transform_2(%arg0: i32) -> (i32, i32) {
    %c0_i32 = arith.constant 0 : i32
    %c0_i32_0 = arith.constant 0 : i32
    return %arg0, %c0_i32 : i32, i32
  }
}

</mosaic_0001>

<llo_original>
// kernel: tpu_custom_call.1
$region0: #{tpu_custom_call.1}
  #allocation0 [shape = 'u32[]', space=smem, size = 0x4, offset = 0x4, fixed_abs, tag = 'smem constant byte address 0x4 - core index']
  #allocation1 [shape = 'u32[144,128]{1,0:T(1,128)}', space=vmem, size = 0x12000, scoped, tag = 'internal scratch']
  %s0 = inlined_call_operand.hbm [shape: f32[32], index: 0, kind: input, shape index: {}]
  %s1 = inlined_call_operand.vmem [shape: f32[1,128], index: 1, kind: input, shape index: {}]
  %s2 = inlined_call_operand.hbm [shape: f32[1,128], index: 2, kind: output, shape index: {}]
  %s3 = sld [smem:[#allocation0]]
  $region22: #{tpu_custom_call.1} parent=0
    _
  %s5 = ssub.s32 1, %s3
  %s6 = scalar_select 0, %s5, %s3
  $region1: #{tpu_custom_call.1} parent=0
    #allocation2 [shape = 'u8[512]{0}', space=smem, size = 0x200, scoped, tag = 'input window, operand 0, single buffered']
    #allocation3 [shape = 's32[1]{0}', space=sflag, size = 0x4, scoped, tag = 'scoped memory for tpu_custom_call.1']
    #allocation4 [shape = 's32[1]{0}', space=sflag, size = 0x4, scoped, tag = 'scoped memory for tpu_custom_call.1']
    #allocation5 [shape = 'u8[4096]{0}', space=vmem, size = 0x1000, scoped, tag = 'output window, operand 0, single buffered']
    %7 = vsyncpa [#allocation4], 0
    %8 = vsyncpa [#allocation3], 0
    // Predicated region
    $region2: #{tpu_custom_call.1} parent=1 // pred_check
      _
    $region3: #{tpu_custom_call.1} parent=1 // pred_check_branch
      %10 = sbr.rel (0) target = $region5
    $region4: #{tpu_custom_call.1} parent=1 // pred_region
      %s12 = ssub.s32 16, 16
      %13 = vsyncadd [#allocation4], %s12
      %16 = dma.hbm_to_smem %s0, 16, [#allocation2], [#allocation4]
    $region5: #{tpu_custom_call.1} parent=1 // pred_fallthru
      _
    // Predicated region
    $region6: #{tpu_custom_call.1} parent=1 // pred_check
      _
    $region7: #{tpu_custom_call.1} parent=1 // pred_check_branch
      %18 = sbr.rel (0) target = $region9
    $region8: #{tpu_custom_call.1} parent=1 // pred_region
      _
    $region9: #{tpu_custom_call.1} parent=1 // pred_fallthru
      _
    // Predicated region
    $region10: #{tpu_custom_call.1} parent=1 // pred_check
      _
    $region11: #{tpu_custom_call.1} parent=1 // pred_check_branch
      %20 = sbr.rel (0) target = $region13
    $region12: #{tpu_custom_call.1} parent=1 // pred_region
      %21 = dma.done [#allocation4], 16
    $region13: #{tpu_custom_call.1} parent=1 // pred_fallthru
      _
    %22 = sfence
    %v23 = vld [vmem:[%s1] sm:$0xff]
    %s24 = sld [smem:[#allocation2 + $0x14]]
    %s25 = sld [smem:[#allocation2]]
    %v26 = vstv %s25
    %v27 = vmul.f32 %v26, %v23
    %s28 = sld [smem:[#allocation2 + $0xa]]
    %v29 = vstv %s28
    %v30 = vadd.f32 %v27, %v29
    %v31 = vtanh.pop %v30
    %v32 = vstv %s24
    %v33 = vmul.f32 %v32, %v31
    %s34 = sld [smem:[#allocation2 + $0x15]]
    %s35 = sld [smem:[#allocation2 + $0x1]]
    %v36 = vstv %s35
    %v37 = vmul.f32 %v36, %v23
    %s38 = sld [smem:[#allocation2 + $0xb]]
    %v39 = vstv %s38
    %v40 = vadd.f32 %v37, %v39
    %v41 = vtanh.pop %v40
    %v42 = vstv %s34
    %v43 = vmul.f32 %v42, %v41
    %v44 = vadd.f32 %v33, %v43
    %s45 = sld [smem:[#allocation2 + $0x16]]
    %s46 = sld [smem:[#allocation2 + $0x2]]
    %v47 = vstv %s46
    %v48 = vmul.f32 %v47, %v23
    %s49 = sld [smem:[#allocation2 + $0xc]]
    %v50 = vstv %s49
    %v51 = vadd.f32 %v48, %v50
    %v52 = vtanh.pop %v51
    %v53 = vstv %s45
    %v54 = vmul.f32 %v53, %v52
    %v55 = vadd.f32 %v44, %v54
    %s56 = sld [smem:[#allocation2 + $0x17]]
    %s57 = sld [smem:[#allocation2 + $0x3]]
    %v58 = vstv %s57
    %v59 = vmul.f32 %v58, %v23
    %s60 = sld [smem:[#allocation2 + $0xd]]
    %v61 = vstv %s60
    %v62 = vadd.f32 %v59, %v61
    %v63 = vtanh.pop %v62
    %v64 = vstv %s56
    %v65 = vmul.f32 %v64, %v63
    %v66 = vadd.f32 %v55, %v65
    %s67 = sld [smem:[#allocation2 + $0x18]]
    %s68 = sld [smem:[#allocation2 + $0x4]]
    %v69 = vstv %s68
    %v70 = vmul.f32 %v69, %v23
    %s71 = sld [smem:[#allocation2 + $0xe]]
    %v72 = vstv %s71
    %v73 = vadd.f32 %v70, %v72
    %v74 = vtanh.pop %v73
    %v75 = vstv %s67
    %v76 = vmul.f32 %v75, %v74
    %v77 = vadd.f32 %v66, %v76
    %s78 = sld [smem:[#allocation2 + $0x19]]
    %s79 = sld [smem:[#allocation2 + $0x5]]
    %v80 = vstv %s79
    %v81 = vmul.f32 %v80, %v23
    %s82 = sld [smem:[#allocation2 + $0xf]]
    %v83 = vstv %s82
    %v84 = vadd.f32 %v81, %v83
    %v85 = vtanh.pop %v84
    %v86 = vstv %s78
    %v87 = vmul.f32 %v86, %v85
    %v88 = vadd.f32 %v77, %v87
    %s89 = sld [smem:[#allocation2 + $0x1a]]
    %s90 = sld [smem:[#allocation2 + $0x6]]
    %v91 = vstv %s90
    %v92 = vmul.f32 %v91, %v23
    %s93 = sld [smem:[#allocation2 + $0x10]]
    %v94 = vstv %s93
    %v95 = vadd.f32 %v92, %v94
    %v96 = vtanh.pop %v95
    %v97 = vstv %s89
    %v98 = vmul.f32 %v97, %v96
    %v99 = vadd.f32 %v88, %v98
    %s100 = sld [smem:[#allocation2 + $0x1b]]
    %s101 = sld [smem:[#allocation2 + $0x7]]
    %v102 = vstv %s101
    %v103 = vmul.f32 %v102, %v23
    %s104 = sld [smem:[#allocation2 + $0x11]]
    %v105 = vstv %s104
    %v106 = vadd.f32 %v103, %v105
    %v107 = vtanh.pop %v106
    %v108 = vstv %s100
    %v109 = vmul.f32 %v108, %v107
    %v110 = vadd.f32 %v99, %v109
    %s111 = sld [smem:[#allocation2 + $0x1c]]
    %s112 = sld [smem:[#allocation2 + $0x8]]
    %v113 = vstv %s112
    %v114 = vmul.f32 %v113, %v23
    %s115 = sld [smem:[#allocation2 + $0x12]]
    %v116 = vstv %s115
    %v117 = vadd.f32 %v114, %v116
    %v118 = vtanh.pop %v117
    %v119 = vstv %s111
    %v120 = vmul.f32 %v119, %v118
    %v121 = vadd.f32 %v110, %v120
    %s122 = sld [smem:[#allocation2 + $0x1d]]
    %s123 = sld [smem:[#allocation2 + $0x9]]
    %v124 = vstv %s123
    %v125 = vmul.f32 %v124, %v23
    %s126 = sld [smem:[#allocation2 + $0x13]]
    %v127 = vstv %s126
    %v128 = vadd.f32 %v125, %v127
    %v129 = vtanh.pop %v128
    %v130 = vstv %s122
    %v131 = vmul.f32 %v130, %v129
    %v132 = vadd.f32 %v121, %v131
    %s133 = sld [smem:[#allocation2 + $0x1e]]
    %v134 = vstv %s133
    %v135 = vadd.f32 %v132, %v134
    %136 = vst [vmem:[#allocation5] sm:$0xff] %v135
    // Predicated region
    $region14: #{tpu_custom_call.1} parent=1 // pred_check
      _
    $region15: #{tpu_custom_call.1} parent=1 // pred_check_branch
      %138 = sbr.rel (0) target = $region17
    $region16: #{tpu_custom_call.1} parent=1 // pred_region
      %s140 = ssub.s32 128, 16
      %141 = vsyncadd [#allocation3], %s140
      %s142 = sshll.u32 [#allocation5], 4
      %s143 = int_to_ptr.vmem [resolvable:$true] %s142
      %148 = dma.vmem_to_hbm [thread:$0]  %s143, 16, %s2, [#allocation3], 16, 16, 1
    $region17: #{tpu_custom_call.1} parent=1 // pred_fallthru
      _
    // Predicated region
    $region18: #{tpu_custom_call.1} parent=1 // pred_check
      _
    $region19: #{tpu_custom_call.1} parent=1 // pred_check_branch
      %150 = sbr.rel (0) target = $region21
    $region20: #{tpu_custom_call.1} parent=1 // pred_region
      %151 = dma.done [#allocation3], 128
    $region21: #{tpu_custom_call.1} parent=1 // pred_fallthru
      _
    %152 = vsyncpa [#allocation3], 1
    %153 = vsyncpa [#allocation4], 1

</llo_original>
